<compile_context>
chip_gen: v6e
topology: v6e:2x2x1
jax: 0.10.0
libtpu: 0.0.40
codegen_flags: <defaults>
</compile_context>

<pallas_src>
import functools

import jax
import jax.numpy as jnp
from jax.experimental import pallas as pl
from jax.experimental.pallas import tpu as pltpu


_VMEM_TILE_BUDGET = 12 * 1024 * 1024   # per-step working set cap (fits v5e 16 MiB default)
_VMEM_LIMIT_BYTES = 32 * 1024 * 1024   # explicit scoped-VMEM limit (<= v7x 64 MiB physical)


def _round_up(x, m):
    return (x + m - 1) // m * m


def _cdiv(a, b):
    return -(-a // b)


# --------------------------------------------------------------------------
# Pallas kernels:  out = relu((A @ W) * scale + bias)
#   A: bf16, W: bf16 (MXU), f32 accumulation, f32 per-channel scale/bias
#   epilogue, bf16 output.
# --------------------------------------------------------------------------
def _mm_scale_bias_relu_kernel(a_ref, w_ref, s_ref, b_ref, o_ref):
    # Single K block: no scratch, no K loop, fully fused epilogue.
    acc = jnp.dot(a_ref[...], w_ref[...], preferred_element_type=jnp.float32)
    o_ref[...] = jnp.maximum(acc * s_ref[...] + b_ref[...], 0.0).astype(o_ref.dtype)


def _mm_scale_bias_relu_kloop_kernel(a_ref, w_ref, s_ref, b_ref, o_ref, acc_ref):
    # K split across the (last, "arbitrary") grid axis with an f32 VMEM accumulator.
    @pl.when(pl.program_id(2) == 0)
    def _init():
        acc_ref[...] = jnp.zeros_like(acc_ref)

    acc_ref[...] += jnp.dot(a_ref[...], w_ref[...],
                            preferred_element_type=jnp.float32)

    @pl.when(pl.program_id(2) == pl.num_programs(2) - 1)
    def _finalize():
        o_ref[...] = jnp.maximum(
            acc_ref[...] * s_ref[...] + b_ref[...], 0.0).astype(o_ref.dtype)


# --------------------------------------------------------------------------
# Tiling
# --------------------------------------------------------------------------
def _k_tiling(k):
    """(padded K, K tile).  K<128: single 16-aligned block (full-dim block is
    legal; avoids inflating A traffic).  Otherwise 128-aligned; split only when
    K > 2048, picking tk to minimize padding."""
    if k < 128:
        kp = _round_up(k, 16)
        return kp, kp
    if k <= 2048:
        kp = _round_up(k, 128)
        return kp, kp
    steps = _cdiv(k, 2048)
    tk = _round_up(_cdiv(k, steps), 128)
    kp = _round_up(k, tk)
    return kp, tk


def _pick_tiles(m, k, n):
    # N (lane) tile: prefer 256 (native v6e/v7x MXU width) when padding <= 25%.
    np128 = _round_up(n, 128)
    np256 = _round_up(n, 256)
    if np256 == np128 or (np256 - n) * 4 <= n:
        np_, tn = np256, 256
    else:
        np_, tn = np128, 128

    kp, tk = _k_tiling(k)

    # M (sublane) tile: as large as the VMEM tile budget allows, preferring
    # low padding waste (avoids a separate jnp.pad pass over A when possible).
    m8 = _round_up(m, 8)

    def _fits(tm):
        vmem = (2 * tm * tk * 2      # A tile, double-buffered bf16
                + 2 * tk * tn * 2    # W tile, double-buffered bf16
                + 2 * tm * tn * 2    # out tile, double-buffered bf16
                + tm * tn * 4        # f32 accumulator scratch (worst case)
                + 4 * tn * 4)        # scale + bias
        return vmem <= _VMEM_TILE_BUDGET

    tm = 8
    for cand in (1024, 512, 256, 128, 64, 32, 16, 8):
        if cand > m8:
            continue
        waste = _round_up(m, cand) - m
        if _fits(cand) and waste <= max(m // 8, 64):
            tm = cand
            break

    # v7x megacore: expose >= 2 blocks along a "parallel" axis when worthwhile.
    if m > 256 and (np_ // tn) < 2 and _cdiv(m, tm) < 2:
        tm = _round_up(_cdiv(m8, 2), 8)

    mp = _round_up(m, tm)
    return tm, tn, tk, mp, np_, kp


# --------------------------------------------------------------------------
# Matmul + BN-epilogue + ReLU wrapper
# --------------------------------------------------------------------------
def _matmul_scale_bias_relu(a_kp, w, scale, bias, out_dtype=jnp.bfloat16):
    """relu((a @ w) * scale + bias).  `a_kp` is bf16 and already K-padded."""
    m, a_k = a_kp.shape
    k, n = w.shape
    tm, tn, tk, mp, np_, kp = _pick_tiles(m, k, n)
    assert a_k == kp, (a_k, kp)

    a_p = a_kp.astype(jnp.bfloat16)
    if mp != m:
        a_p = jnp.pad(a_p, ((0, mp - m), (0, 0)))
    w_p = w.astype(jnp.bfloat16)
    if (kp, np_) != (k, n):
        w_p = jnp.pad(w_p, ((0, kp - k), (0, np_ - n)))
    s_p = jnp.pad(scale.astype(jnp.float32).reshape(1, n), ((0, 0), (0, np_ - n)))
    b_p = jnp.pad(bias.astype(jnp.float32).reshape(1, n), ((0, 0), (0, np_ - n)))

    cparams = pltpu.CompilerParams
    if kp // tk == 1:
        # Fast path: whole K in one block, no accumulator scratch, 2-D grid.
        out = pl.pallas_call(
            _mm_scale_bias_relu_kernel,
            out_shape=jax.ShapeDtypeStruct((mp, np_), out_dtype),
            grid_spec=pltpu.PrefetchScalarGridSpec(
                num_scalar_prefetch=0,
                grid=(mp // tm, np_ // tn),
                in_specs=[
                    pl.BlockSpec((tm, kp), lambda i, j: (i, 0)),
                    pl.BlockSpec((kp, tn), lambda i, j: (0, j)),
                    pl.BlockSpec((1, tn), lambda i, j: (0, j)),
                    pl.BlockSpec((1, tn), lambda i, j: (0, j)),
                ],
                out_specs=pl.BlockSpec((tm, tn), lambda i, j: (i, j)),
            ),
            compiler_params=cparams(
                dimension_semantics=("parallel", "parallel"),
                vmem_limit_bytes=_VMEM_LIMIT_BYTES,
            ),
        )(a_p, w_p, s_p, b_p)
    else:
        out = pl.pallas_call(
            _mm_scale_bias_relu_kloop_kernel,
            out_shape=jax.ShapeDtypeStruct((mp, np_), out_dtype),
            grid_spec=pltpu.PrefetchScalarGridSpec(
                num_scalar_prefetch=0,
                grid=(mp // tm, np_ // tn, kp // tk),
                in_specs=[
                    pl.BlockSpec((tm, tk), lambda i, j, kk: (i, kk)),
                    pl.BlockSpec((tk, tn), lambda i, j, kk: (kk, j)),
                    pl.BlockSpec((1, tn), lambda i, j, kk: (0, j)),
                    pl.BlockSpec((1, tn), lambda i, j, kk: (0, j)),
                ],
                out_specs=pl.BlockSpec((tm, tn), lambda i, j, kk: (i, j)),
                scratch_shapes=[pltpu.VMEM((tm, tn), jnp.float32)],
            ),
            compiler_params=cparams(
                dimension_semantics=("parallel", "parallel", "arbitrary"),
                vmem_limit_bytes=_VMEM_LIMIT_BYTES,
            ),
        )(a_p, w_p, s_p, b_p)
    return out[:m, :n]


# --------------------------------------------------------------------------
# Glue: im2col patch extraction (bf16, K zero-padding folded into the concat)
# --------------------------------------------------------------------------
def _extract_patches(x_nhwc, kh, kw, stride, pad, k_pad):
    sh, sw = stride
    ph, pw = pad
    n, h, w, c = x_nhwc.shape
    xp = jnp.pad(x_nhwc, ((0, 0), (ph, ph), (pw, pw), (0, 0)))
    hp, wp = h + 2 * ph, w + 2 * pw
    ho = (hp - kh) // sh + 1
    wo = (wp - kw) // sw + 1
    cols = []
    for i in range(kh):
        for j in range(kw):
            cols.append(
                xp[:, i:i + sh * (ho - 1) + 1:sh,
                      j:j + sw * (wo - 1) + 1:sw, :])
    k = kh * kw * c
    if k_pad > k:  # fold the K zero-padding into the single concat pass
        cols.append(jnp.zeros((n, ho, wo, k_pad - k), x_nhwc.dtype))
    patches = jnp.concatenate(cols, axis=-1)     # (N, Ho, Wo, k_pad), (i, j, c)
    return patches.reshape(n * ho * wo, k_pad), (n, ho, wo)


# --------------------------------------------------------------------------
# BasicConv2d forward:  relu(bn(conv(x)))   (inference-mode BN, eps = 1e-3)
# --------------------------------------------------------------------------
def basic_conv2d_nhwc(x_nhwc, w_oihw, gamma, beta, running_mean, running_var,
                      *, stride=(1, 1), padding=(0, 0), out_dtype=jnp.bfloat16):
    """NHWC -> NHWC (bf16) BasicConv2d.  Use this entry point when chaining
    blocks so activations stay NHWC/bf16 end-to-end."""
    eps = 1e-3
    cout, cin, kh, kw = w_oihw.shape
    sh, sw = stride
    ph, pw = padding

    # Fold BN(eval) into per-channel f32 scale/bias applied in the kernel epilogue.
    scale = gamma / jnp.sqrt(running_var + eps)          # (Cout,)
    bias = beta - running_mean * scale                   # (Cout,)

    x = x_nhwc.astype(jnp.bfloat16)
    k = kh * kw * cin
    kp, _ = _k_tiling(k)

    if (kh, kw) == (1, 1) and (ph, pw) == (0, 0):
        # 1x1 conv: no im2col, just a (strided) view + reshape.
        xs = x[:, ::sh, ::sw, :]
        n, ho, wo, c = xs.shape
        patches = xs.reshape(n * ho * wo, c)
        if kp > c:
            patches = jnp.pad(patches, ((0, 0), (0, kp - c)))
    else:
        patches, (n, ho, wo) = _extract_patches(x, kh, kw, (sh, sw), (ph, pw), kp)

    # Weight -> (kh*kw*cin, cout), matching the patch column order (i, j, c).
    # (Scale is NOT folded into the bf16 weights; it is applied in f32 in-kernel.)
    w_mat = jnp.transpose(w_oihw, (2, 3, 1, 0)).reshape(k, cout)

    out2d = _matmul_scale_bias_relu(patches, w_mat, scale, bias, out_dtype)
    return out2d.reshape(n, ho, wo, cout)


@functools.partial(jax.jit, static_argnames=("stride", "padding", "out_dtype"))
def basic_conv2d(x_nchw, w_oihw, gamma, beta, running_mean, running_var,
                 *, stride=(1, 1), padding=(0, 0), out_dtype=jnp.bfloat16):
    """PyTorch-parity NCHW interface; layout conversion only at this boundary."""
    x = jnp.transpose(x_nchw.astype(jnp.bfloat16), (0, 2, 3, 1))   # NCHW -> NHWC (bf16)
    y = basic_conv2d_nhwc(x, w_oihw, gamma, beta, running_mean, running_var,
                          stride=stride, padding=padding, out_dtype=out_dtype)
    return jnp.transpose(y, (0, 3, 1, 2))                          # back to NCHW


# --------------------------------------------------------------------------
# Parameter construction (deterministic, synthetic) + pure-JAX reference
# --------------------------------------------------------------------------
def make_basic_conv2d_params(key, cin, cout, kh, kw):
    k_w, k_g, k_b, k_m, k_v = jax.random.split(key, 5)
    return {
        "w": jax.random.normal(k_w, (cout, cin, kh, kw), jnp.float32) * 0.1,
        "gamma": jax.random.uniform(k_g, (cout,), jnp.float32, 0.5, 1.5),
        "beta": jax.random.normal(k_b, (cout,), jnp.float32) * 0.1,
        "mean": jax.random.normal(k_m, (cout,), jnp.float32) * 0.1,
        "var": jax.random.uniform(k_v, (cout,), jnp.float32, 0.5, 1.5),
    }


def ref_basic_conv2d(x_nchw, p, stride, padding, eps=1e-3):
    y = jax.lax.conv_general_dilated(
        x_nchw, p["w"], window_strides=stride,
        padding=[(padding[0], padding[0]), (padding[1], padding[1])],
        dimension_numbers=("NCHW", "OIHW", "NCHW"),
    )
    scale = p["gamma"] / jnp.sqrt(p["var"] + eps)
    bias = p["beta"] - p["mean"] * scale
    y = y * scale[None, :, None, None] + bias[None, :, None, None]
    return jnp.maximum(y, 0.0)


# --------------------------------------------------------------------------
if __name__ == "__main__":
    key = jax.random.PRNGKey(0)
    k_x, k_p1, k_p2, k_p3 = jax.random.split(key, 4)

    N, CIN, H, W = 2, 4, 16, 16
    x = jax.random.normal(k_x, (N, CIN, H, W), jnp.float32)

    # (params, (kh, kw), stride, padding) -- typical BasicConv2d configs.
    cases = [
        (make_basic_conv2d_params(k_p1, CIN, 32, 3, 3), (3, 3), (1, 1), (1, 1)),
        (make_basic_conv2d_params(k_p2, CIN, 16, 1, 1), (1, 1), (1, 1), (0, 0)),
        (make_basic_conv2d_params(k_p3, CIN, 24, 3, 3), (3, 3), (2, 2), (0, 0)),
    ]

    for p, (kh, kw), stride, padding in cases:
        out = basic_conv2d(
            x, p["w"], p["gamma"], p["beta"], p["mean"], p["var"],
            stride=stride, padding=padding,
        )
        out = jax.block_until_ready(out)

        cout = p["w"].shape[0]
        ho = (H + 2 * padding[0] - kh) // stride[0] + 1
        wo = (W + 2 * padding[1] - kw) // stride[1] + 1
        assert out.shape == (N, cout, ho, wo), out.shape

        ref = jax.block_until_ready(ref_basic_conv2d(x, p, stride, padding))
        out_f32 = out.astype(jnp.float32)
        # bf16 activations/weights/output (f32 accumulation) => loose tolerance.
        assert jnp.allclose(out_f32, ref, atol=5e-2, rtol=5e-2), (
            float(jnp.max(jnp.abs(out_f32 - ref))))

    print("KERNEL_OK")
</pallas_src>

<mosaic_0001>
module attributes {stable_mosaic.version = 11 : i64} {
  func.func @_mm_scale_bias_relu_kernel(%arg0: i32, %arg1: i32, %arg2: memref<256x48xbf16, #tpu.memory_space<vmem>>, %arg3: memref<48x128xbf16, #tpu.memory_space<vmem>>, %arg4: memref<1x128xf32, #tpu.memory_space<vmem>>, %arg5: memref<1x128xf32, #tpu.memory_space<vmem>>, %arg6: memref<256x128xbf16, #tpu.memory_space<vmem>>) attributes {dimension_semantics = [#tpu.dimension_semantics<parallel>, #tpu.dimension_semantics<parallel>], iteration_bounds = array<i64: 2, 1>, scalar_prefetch = 0 : i64, scratch_operands = 0 : i64, tpu.core_type = #tpu.core_type<tc>, window_params = [{transform_indices = @transform_0, window_bounds = array<i64: 256, 48>}, {transform_indices = @transform_1, window_bounds = array<i64: 48, 128>}, {transform_indices = @transform_2, window_bounds = array<i64: 1, 128>}, {transform_indices = @transform_3, window_bounds = array<i64: 1, 128>}, {transform_indices = @transform_4, window_bounds = array<i64: 256, 128>}]} {
    %c0 = arith.constant 0 : index
    %c0_0 = arith.constant 0 : index
    %0 = vector.load %arg2[%c0, %c0_0] : memref<256x48xbf16, #tpu.memory_space<vmem>>, vector<256x48xbf16>
    %c0_1 = arith.constant 0 : index
    %c0_2 = arith.constant 0 : index
    %1 = vector.load %arg3[%c0_1, %c0_2] : memref<48x128xbf16, #tpu.memory_space<vmem>>, vector<48x128xbf16>
    %cst = arith.constant dense<0.000000e+00> : vector<256x128xf32>
    %2 = tpu.matmul %0, %1, %cst {dimension_numbers = #tpu.dot_dimension_numbers<[1], [0], [0], [1], [0, 0, 1, 1], [], []>} : vector<256x48xbf16>, vector<48x128xbf16>, vector<256x128xf32> -> vector<256x128xf32>
    %c0_3 = arith.constant 0 : index
    %c0_4 = arith.constant 0 : index
    %3 = vector.load %arg4[%c0_3, %c0_4] : memref<1x128xf32, #tpu.memory_space<vmem>>, vector<1x128xf32>
    %4 = vector.broadcast %3 : vector<1x128xf32> to vector<256x128xf32>
    %5 = arith.mulf %2, %4 : vector<256x128xf32>
    %c0_5 = arith.constant 0 : index
    %c0_6 = arith.constant 0 : index
    %6 = vector.load %arg5[%c0_5, %c0_6] : memref<1x128xf32, #tpu.memory_space<vmem>>, vector<1x128xf32>
    %7 = vector.broadcast %6 : vector<1x128xf32> to vector<256x128xf32>
    %8 = arith.addf %5, %7 : vector<256x128xf32>
    %cst_7 = arith.constant 0.000000e+00 : f32
    %9 = vector.broadcast %cst_7 : f32 to vector<256x128xf32>
    %10 = arith.maximumf %8, %9 : vector<256x128xf32>
    %11 = arith.truncf %10 : vector<256x128xf32> to vector<256x128xbf16>
    %c0_8 = arith.constant 0 : index
    %c0_9 = arith.constant 0 : index
    %12 = vector.load %arg6[%c0_8, %c0_9] : memref<256x128xbf16, #tpu.memory_space<vmem>>, vector<256x128xbf16>
    tpu.vector_store %arg6[%c0_8, %c0_9], %11 {strides = array<i32>} : memref<256x128xbf16, #tpu.memory_space<vmem>>, vector<256x128xbf16>,
    return
  }
  func.func @transform_0(%arg0: i32, %arg1: i32) -> (i32, i32) {
    %c0_i32 = arith.constant 0 : i32
    %c0_i32_0 = arith.constant 0 : i32
    return %arg0, %c0_i32 : i32, i32
  }
  func.func @transform_1(%arg0: i32, %arg1: i32) -> (i32, i32) {
    %c0_i32 = arith.constant 0 : i32
    %c0_i32_0 = arith.constant 0 : i32
    return %c0_i32, %arg1 : i32, i32
  }
  func.func @transform_2(%arg0: i32, %arg1: i32) -> (i32, i32) {
    %c0_i32 = arith.constant 0 : i32
    %c0_i32_0 = arith.constant 0 : i32
    return %c0_i32, %arg1 : i32, i32
  }
  func.func @transform_3(%arg0: i32, %arg1: i32) -> (i32, i32) {
    %c0_i32 = arith.constant 0 : i32
    %c0_i32_0 = arith.constant 0 : i32
    return %c0_i32, %arg1 : i32, i32
  }
  func.func @transform_4(%arg0: i32, %arg1: i32) -> (i32, i32) {
    %c0_i32 = arith.constant 0 : i32
    return %arg0, %arg1 : i32, i32
  }
}

</mosaic_0001>

<llo_original>
// kernel: basic_conv2d.1
$region0: #{basic_conv2d.1}
  #allocation0 [shape = 'u32[]', space=smem, size = 0x4, offset = 0x4, fixed_abs, tag = 'smem constant byte address 0x4 - core index']
  #allocation1 [shape = 'u32[144,128]{1,0:T(1,128)}', space=vmem, size = 0x12000, scoped, tag = 'internal scratch']
  %s0 = inlined_call_operand.vmem [shape: bf16[512,48], index: 0, kind: input, shape index: {}]
  %s1 = inlined_call_operand.vmem [shape: bf16[48,128], index: 1, kind: input, shape index: {}]
  %s2 = inlined_call_operand.vmem [shape: f32[1,128], index: 2, kind: input, shape index: {}]
  %s3 = inlined_call_operand.vmem [shape: f32[1,128], index: 3, kind: input, shape index: {}]
  %s4 = inlined_call_operand.hbm [shape: bf16[512,128], index: 4, kind: output, shape index: {}]
  %s5 = sld [smem:[#allocation0]]
  $region49: #{basic_conv2d.1} parent=0
    _
  %s7 = ssub.s32 1, %s5
  %s8 = scalar_select 0, %s7, %s5
  $region1: #{basic_conv2d.1} parent=0
    #allocation2 [shape = 'u8[131072]{0}', space=vmem, size = 0x20000, scoped, tag = 'output window, operand 0']
    #allocation3 [shape = 's32[2]{0}', space=sflag, size = 0x8, scoped, tag = 'scoped memory for basic_conv2d.1']
    %9 = vsyncpa [#allocation3], 0
    %s10 = scalar_lea.sflag [#allocation3], 1
    %11 = vsyncpa %s10, 0
    loop: start=0, step=1, limit=4
    $region2: #{basic_conv2d.1} parent=1 // loop_pre_header
      _
    $region3: #{basic_conv2d.1} parent=1 // loop_header
      %s13 = sphi 0, %s17
      %p14 = scmp.ge.s32.totalorder %s13, 4
      %s20 = sphi 0, %s32
      %s21 = sphi 0, %s28
      %s22 = sphi 0, %s20
      %s23 = sphi 0, %s21
      %s24 = sphi 0, %s22
      %s25 = sphi 0, %s23
      %s35 = sphi 0, %s37
      %s38 = sphi 0, %s35
      %s39 = sphi 0, %s38
      %s55 = sphi 0, %s39
      %s61 = sphi 0, %s63
      %s64 = sphi 0, %s61
      %s65 = sphi 0, %s64
      %s81 = sphi 0, %s65
      %s87 = sphi 0, %s89
      %s90 = sphi 0, %s87
      %s91 = sphi 0, %s90
      %s107 = sphi 0, %s91
      %s113 = sphi 0, %s115
      %s116 = sphi 0, %s113
      %s117 = sphi 0, %s116
      %s133 = sphi 0, %s117
      %s141 = sphi 0, %s143
      %s144 = sphi 0, %s141
      %s145 = sphi 0, %s144
      %s161 = sphi 0, %s145
    $region4: #{basic_conv2d.1} parent=1 // loop_header_branch
      %16 = sbr.rel (%p14) target = $region8
    $region5: #{basic_conv2d.1} parent=1 // loop_body
      %s18 = ssub.s32 %s13, 1
      %s19 = ssub.s32 %s13, 2
      %s26 = sadd.s32 1, %s21
      %p27 = scmp.ge.s32.totalorder %s26, 1
      %s28 = scalar_select %p27, 0, %s26
      %s29 = sadd.s32 1, %s20
      %s30 = scalar_select %p27, %s29, %s20
      %p31 = scmp.ge.s32.totalorder %s30, 2
      %s32 = scalar_select %p31, 0, %s30
      %s33 = ssub.s32 %s20, %s32
      %p34 = scmp.eq.s32.totalorder %s33, 0
      %s36 = sadd.s32 %s35, 1
      %s37 = scalar_select %p34, %s35, %s36
      %p40 = pneg %p34
      %p41 = scmp.eq.s32.totalorder %s13, 1
      %p42 = por %p40, %p41
      %p43 = scmp.ne.s32.totalorder %s35, %s38
      %p44 = scmp.eq.s32.totalorder %s13, 0
      %p45 = por %p43, %p44
      %p46 = scmp.ne.s32.totalorder %s35, %s38
      %p47 = scmp.eq.s32.totalorder %s18, 1
      %p48 = por %p46, %p47
      %p49 = scmp.ne.s32.totalorder %s38, %s39
      %p50 = scmp.eq.s32.totalorder %s18, 0
      %p51 = por %p49, %p50
      %p52 = scmp.ne.s32.totalorder %s38, %s39
      %p53 = scmp.eq.s32.totalorder %s19, 1
      %p54 = por %p52, %p53
      %p56 = scmp.ne.s32.totalorder %s39, %s55
      %p57 = scmp.eq.s32.totalorder %s19, 0
      %p58 = por %p56, %p57
      %s59 = ssub.s32 %s21, %s28
      %p60 = scmp.eq.s32.totalorder %s59, 0
      %s62 = sadd.s32 %s61, 1
      %s63 = scalar_select %p60, %s61, %s62
      %p66 = pneg %p60
      %p67 = scmp.eq.s32.totalorder %s13, 1
      %p68 = por %p66, %p67
      %p69 = scmp.ne.s32.totalorder %s61, %s64
      %p70 = scmp.eq.s32.totalorder %s13, 0
      %p71 = por %p69, %p70
      %p72 = scmp.ne.s32.totalorder %s61, %s64
      %p73 = scmp.eq.s32.totalorder %s18, 1
      %p74 = por %p72, %p73
      %p75 = scmp.ne.s32.totalorder %s64, %s65
      %p76 = scmp.eq.s32.totalorder %s18, 0
      %p77 = por %p75, %p76
      %p78 = scmp.ne.s32.totalorder %s64, %s65
      %p79 = scmp.eq.s32.totalorder %s19, 1
      %p80 = por %p78, %p79
      %p82 = scmp.ne.s32.totalorder %s65, %s81
      %p83 = scmp.eq.s32.totalorder %s19, 0
      %p84 = por %p82, %p83
      %s85 = ssub.s32 %s21, %s28
      %p86 = scmp.eq.s32.totalorder %s85, 0
      %s88 = sadd.s32 %s87, 1
      %s89 = scalar_select %p86, %s87, %s88
      %p92 = pneg %p86
      %p93 = scmp.eq.s32.totalorder %s13, 1
      %p94 = por %p92, %p93
      %p95 = scmp.ne.s32.totalorder %s87, %s90
      %p96 = scmp.eq.s32.totalorder %s13, 0
      %p97 = por %p95, %p96
      %p98 = scmp.ne.s32.totalorder %s87, %s90
      %p99 = scmp.eq.s32.totalorder %s18, 1
      %p100 = por %p98, %p99
      %p101 = scmp.ne.s32.totalorder %s90, %s91
      %p102 = scmp.eq.s32.totalorder %s18, 0
      %p103 = por %p101, %p102
      %p104 = scmp.ne.s32.totalorder %s90, %s91
      %p105 = scmp.eq.s32.totalorder %s19, 1
      %p106 = por %p104, %p105
      %p108 = scmp.ne.s32.totalorder %s91, %s107
      %p109 = scmp.eq.s32.totalorder %s19, 0
      %p110 = por %p108, %p109
      %s111 = ssub.s32 %s21, %s28
      %p112 = scmp.eq.s32.totalorder %s111, 0
      %s114 = sadd.s32 %s113, 1
      %s115 = scalar_select %p112, %s113, %s114
      %p118 = pneg %p112
      %p119 = scmp.eq.s32.totalorder %s13, 1
      %p120 = por %p118, %p119
      %p121 = scmp.ne.s32.totalorder %s113, %s116
      %p122 = scmp.eq.s32.totalorder %s13, 0
      %p123 = por %p121, %p122
      %p124 = scmp.ne.s32.totalorder %s113, %s116
      %p125 = scmp.eq.s32.totalorder %s18, 1
      %p126 = por %p124, %p125
      %p127 = scmp.ne.s32.totalorder %s116, %s117
      %p128 = scmp.eq.s32.totalorder %s18, 0
      %p129 = por %p127, %p128
      %p130 = scmp.ne.s32.totalorder %s116, %s117
      %p131 = scmp.eq.s32.totalorder %s19, 1
      %p132 = por %p130, %p131
      %p134 = scmp.ne.s32.totalorder %s117, %s133
      %p135 = scmp.eq.s32.totalorder %s19, 0
      %p136 = por %p134, %p135
      %s137 = ssub.s32 %s20, %s32
      %s138 = ssub.s32 %s21, %s28
      %s139 = sor.u32 %s137, %s138
      %p140 = scmp.eq.s32.totalorder %s139, 0
      %s142 = sadd.s32 %s141, 1
      %s143 = scalar_select %p140, %s141, %s142
      %p146 = pneg %p140
      %p147 = scmp.eq.s32.totalorder %s13, 1
      %p148 = por %p146, %p147
      %p149 = scmp.ne.s32.totalorder %s141, %s144
      %p150 = scmp.eq.s32.totalorder %s13, 0
      %p151 = por %p149, %p150
      %p152 = scmp.ne.s32.totalorder %s141, %s144
      %p153 = scmp.eq.s32.totalorder %s18, 1
      %p154 = por %p152, %p153
      %p155 = scmp.ne.s32.totalorder %s144, %s145
      %p156 = scmp.eq.s32.totalorder %s18, 0
      %p157 = por %p155, %p156
      %p158 = scmp.ne.s32.totalorder %s144, %s145
      %p159 = scmp.eq.s32.totalorder %s19, 1
      %p160 = por %p158, %p159
      %p162 = scmp.ne.s32.totalorder %s145, %s161
      %p163 = scmp.eq.s32.totalorder %s19, 0
      %p164 = por %p162, %p163
      %p165 = scmp.le.s32.totalorder 1, %s13
      %p166 = scmp.lt.s32.totalorder %s13, 3
      %p167 = pnand %p165, %p166
      %p168 = pneg %p167
      // Predicated region
      $region9: #{basic_conv2d.1} parent=5 // pred_check
        _
      $region10: #{basic_conv2d.1} parent=5 // pred_check_branch
        %170 = sbr.rel (%p167) target = $region12
      $region11: #{basic_conv2d.1} parent=5 // pred_region
        %s171 = ssub.s32 %s13, 1
        // Predicated region
        $region13: #{basic_conv2d.1} parent=11 // pred_check
          %p172 = pneg %p77
        $region14: #{basic_conv2d.1} parent=11 // pred_check_branch
          %174 = sbr.rel (%p172) target = $region16
        $region15: #{basic_conv2d.1} parent=11 // pred_region
          %p175 = scmp.lt.s32.totalorder %s23, 0
          %s176 = scalar_select %p175, %s23, 0
          %s177 = smul.addr %s176, 4
          %s178 = scalar_lea.vmem %s1, %s177
        $region16: #{basic_conv2d.1} parent=11 // pred_fallthru
          _
        // Predicated region
        $region17: #{basic_conv2d.1} parent=11 // pred_check
          %p179 = pneg %p103
        $region18: #{basic_conv2d.1} parent=11 // pred_check_branch
          %181 = sbr.rel (%p179) target = $region20
        $region19: #{basic_conv2d.1} parent=11 // pred_region
          %p182 = scmp.lt.s32.totalorder %s23, 0
          %s183 = scalar_select %p182, %s23, 0
          %s184 = scalar_lea.vmem %s2, %s183
        $region20: #{basic_conv2d.1} parent=11 // pred_fallthru
          _
        // Predicated region
        $region21: #{basic_conv2d.1} parent=11 // pred_check
          %p185 = pneg %p129
        $region22: #{basic_conv2d.1} parent=11 // pred_check_branch
          %187 = sbr.rel (%p185) target = $region24
        $region23: #{basic_conv2d.1} parent=11 // pred_region
          %p188 = scmp.lt.s32.totalorder %s23, 0
          %s189 = scalar_select %p188, %s23, 0
          %s190 = scalar_lea.vmem %s3, %s189
        $region24: #{basic_conv2d.1} parent=11 // pred_fallthru
          _
      $region12: #{basic_conv2d.1} parent=5 // pred_fallthru
        _
      %p191 = scmp.lt.s32.totalorder %s13, 2
      // Predicated region
      $region25: #{basic_conv2d.1} parent=5 // pred_check
        %p192 = pneg %p191
      $region26: #{basic_conv2d.1} parent=5 // pred_check_branch
        %194 = sbr.rel (%p192) target = $region28
      $region27: #{basic_conv2d.1} parent=5 // pred_region
        // Predicated region
        $region29: #{basic_conv2d.1} parent=27 // pred_check
          %p195 = pneg %p45
        $region30: #{basic_conv2d.1} parent=27 // pred_check_branch
          %197 = sbr.rel (%p195) target = $region32
        $region31: #{basic_conv2d.1} parent=27 // pred_region
          %s198 = smul.u32 32, %s20
          %p199 = scmp.lt.s32.totalorder %s198, 63
          %s200 = scalar_select %p199, %s198, 63
          %s201 = smul.addr %s200, 4
          %s202 = scalar_lea.vmem %s0, %s201
          %s203 = smul.u32 32, %s20
        $region32: #{basic_conv2d.1} parent=27 // pred_fallthru
          _
      $region28: #{basic_conv2d.1} parent=5 // pred_fallthru
        _
      %p204 = scmp.le.s32.totalorder 1, %s13
      %p205 = scmp.lt.s32.totalorder %s13, 3
      %p206 = pnand %p204, %p205
      %p207 = pneg %p206
      // Predicated region
      $region33: #{basic_conv2d.1} parent=5 // pred_check
        _
      $region34: #{basic_conv2d.1} parent=5 // pred_check_branch
        %209 = sbr.rel (%p206) target = $region36
      $region35: #{basic_conv2d.1} parent=5 // pred_region
        %s210 = ssub.s32 %s13, 1
        %s211 = smul.u32 32, %s22
        %p212 = scmp.lt.s32.totalorder %s211, 63
        %s213 = scalar_select %p212, %s211, 63
        %s214 = smul.addr %s213, 4
        %s215 = scalar_lea.vmem %s0, %s214
        %p216 = pneg %p51
        %p217 = pneg %p48
        %p218 = scmp.lt.s32.totalorder %s23, 0
        %s219 = scalar_select %p218, %s23, 0
        %s220 = smul.addr %s219, 4
        %s221 = scalar_lea.vmem %s1, %s220
        %p222 = pneg %p77
        %p223 = pneg %p74
        %p224 = scmp.lt.s32.totalorder %s23, 0
        %s225 = scalar_select %p224, %s23, 0
        %s226 = scalar_lea.vmem %s2, %s225
        %p227 = pneg %p103
        %p228 = pneg %p100
        %p229 = scmp.lt.s32.totalorder %s23, 0
        %s230 = scalar_select %p229, %s23, 0
        %s231 = scalar_lea.vmem %s3, %s230
        %p232 = pneg %p129
        %p233 = pneg %p126
        %p234 = pneg %p157
        %p235 = pneg %p154
        %s236 = sand.u32 %s144, 1
        %s237 = scalar_lea.sflag [#allocation3], %s236
        %s238 = sand.u32 %s144, 1
        %s239 = smul.addr %s238, 128
        %s240 = scalar_lea.vmem [#allocation2], %s239
        %s241 = smul.u32 32, %s22
        %p242 = scmp.lt.s32.totalorder %s241, 63
        %s243 = scalar_select %p242, %s241, 63
        %s244 = smul.addr %s243, 4
        %s245 = scalar_lea.vmem %s0, %s244
        %s246 = smul.u32 32, %s22
        %p247 = scmp.lt.s32.totalorder %s23, 0
        %s248 = scalar_select %p247, %s23, 0
        %s249 = smul.addr %s248, 4
        %s250 = scalar_lea.vmem %s1, %s249
        %p251 = scmp.lt.s32.totalorder %s23, 0
        %s252 = scalar_select %p251, %s23, 0
        %s253 = scalar_lea.vmem %s2, %s252
        %p254 = scmp.lt.s32.totalorder %s23, 0
        %s255 = scalar_select %p254, %s23, 0
        %s256 = scalar_lea.vmem %s3, %s255
        %s257 = smul.u32 32, %s22
        %v259 = vld [vmem:[%s245] sm:$0xf]
        %v260 = vld [vmem:[%s245 + $0x4] sm:$0xf]
        %v261 = vld [vmem:[%s245 + $0x8] sm:$0xf]
        %v262 = vld [vmem:[%s245 + $0xc] sm:$0xf]
        %v263 = vld [vmem:[%s245 + $0x10] sm:$0xf]
        %v264 = vld [vmem:[%s245 + $0x14] sm:$0xf]
        %v265 = vld [vmem:[%s245 + $0x18] sm:$0xf]
        %v266 = vld [vmem:[%s245 + $0x1c] sm:$0xf]
        %v267 = vld [vmem:[%s245 + $0x20] sm:$0xf]
        %v268 = vld [vmem:[%s245 + $0x24] sm:$0xf]
        %v269 = vld [vmem:[%s245 + $0x28] sm:$0xf]
        %v270 = vld [vmem:[%s245 + $0x2c] sm:$0xf]
        %v271 = vld [vmem:[%s245 + $0x30] sm:$0xf]
        %v272 = vld [vmem:[%s245 + $0x34] sm:$0xf]
        %v273 = vld [vmem:[%s245 + $0x38] sm:$0xf]
        %v274 = vld [vmem:[%s245 + $0x3c] sm:$0xf]
        %v275 = vld [vmem:[%s245 + $0x40] sm:$0xf]
        %v276 = vld [vmem:[%s245 + $0x44] sm:$0xf]
        %v277 = vld [vmem:[%s245 + $0x48] sm:$0xf]
        %v278 = vld [vmem:[%s245 + $0x4c] sm:$0xf]
        %v279 = vld [vmem:[%s245 + $0x50] sm:$0xf]
        %v280 = vld [vmem:[%s245 + $0x54] sm:$0xf]
        %v281 = vld [vmem:[%s245 + $0x58] sm:$0xf]
        %v282 = vld [vmem:[%s245 + $0x5c] sm:$0xf]
        %v283 = vld [vmem:[%s245 + $0x60] sm:$0xf]
        %v284 = vld [vmem:[%s245 + $0x64] sm:$0xf]
        %v285 = vld [vmem:[%s245 + $0x68] sm:$0xf]
        %v286 = vld [vmem:[%s245 + $0x6c] sm:$0xf]
        %v287 = vld [vmem:[%s245 + $0x70] sm:$0xf]
        %v288 = vld [vmem:[%s245 + $0x74] sm:$0xf]
        %v289 = vld [vmem:[%s245 + $0x78] sm:$0xf]
        %v290 = vld [vmem:[%s245 + $0x7c] sm:$0xf]
        %v291 = vld [vmem:[%s250] sm:$0xf]
        %v292 = vld [vmem:[%s250 + $0x4] sm:$0xf]
        %v293 = vld [vmem:[%s250 + $0x8] sm:$0xf]
        %v294 = vld [vmem:[%s250 + $0xc] sm:$0xf]
        %v295 = vld [vmem:[%s250 + $0x10] sm:$0xf]
        %v296 = vld [vmem:[%s250 + $0x14] sm:$0xf]
        %v329 = vunpack.c.l.b16 %v259
        %v330 = vunpack.c.l.b16 %v260
        %v331 = vunpack.c.l.b16 %v261
        %v332 = vunpack.c.l.b16 %v262
        %v333 = vunpack.c.l.b16 %v263
        %v334 = vunpack.c.l.b16 %v264
        %v335 = vunpack.c.l.b16 %v265
        %v336 = vunpack.c.l.b16 %v266
        %v337 = vunpack.c.l.b16 %v267
        %v338 = vunpack.c.l.b16 %v268
        %v339 = vunpack.c.l.b16 %v269
        %v340 = vunpack.c.l.b16 %v270
        %v341 = vunpack.c.l.b16 %v271
        %v342 = vunpack.c.l.b16 %v272
        %v343 = vunpack.c.l.b16 %v273
        %v344 = vunpack.c.l.b16 %v274
        %v345 = vunpack.c.l.b16 %v275
        %v346 = vunpack.c.l.b16 %v276
        %v347 = vunpack.c.l.b16 %v277
        %v348 = vunpack.c.l.b16 %v278
        %v349 = vunpack.c.l.b16 %v279
        %v350 = vunpack.c.l.b16 %v280
        %v351 = vunpack.c.l.b16 %v281
        %v352 = vunpack.c.l.b16 %v282
        %v353 = vunpack.c.l.b16 %v283
        %v354 = vunpack.c.l.b16 %v284
        %v355 = vunpack.c.l.b16 %v285
        %v356 = vunpack.c.l.b16 %v286
        %v357 = vunpack.c.l.b16 %v287
        %v358 = vunpack.c.l.b16 %v288
        %v359 = vunpack.c.l.b16 %v289
        %v360 = vunpack.c.l.b16 %v290
        %v361 = vpack.c.b16 %v330, %v329
        %v362 = vpack.c.b16 %v332, %v331
        %v363 = vpack.c.b16 %v334, %v333
        %v364 = vpack.c.b16 %v336, %v335
        %v365 = vpack.c.b16 %v338, %v337
        %v366 = vpack.c.b16 %v340, %v339
        %v367 = vpack.c.b16 %v342, %v341
        %v368 = vpack.c.b16 %v344, %v343
        %v369 = vpack.c.b16 %v346, %v345
        %v370 = vpack.c.b16 %v348, %v347
        %v371 = vpack.c.b16 %v350, %v349
        %v372 = vpack.c.b16 %v352, %v351
        %v373 = vpack.c.b16 %v354, %v353
        %v374 = vpack.c.b16 %v356, %v355
        %v375 = vpack.c.b16 %v358, %v357
        %v376 = vpack.c.b16 %v360, %v359
        %v383 = vunpack.c.l.b16 %v291
        %v384 = vunpack.c.l.b16 %v292
        %v385 = vunpack.c.l.b16 %v293
        %v386 = vunpack.c.l.b16 %v294
        %v387 = vunpack.c.l.b16 %v295
        %v388 = vunpack.c.l.b16 %v296
        %v389 = vpack.c.b16 %v384, %v383
        %v390 = vpack.c.b16 %v386, %v385
        %v391 = vpack.c.b16 %v388, %v387
        %vm395 = vcmask 392192
        %v397 = vsel %vm395, %v361, 0
        %v400 = vsel %vm395, %v362, 0
        %v403 = vsel %vm395, %v363, 0
        %v406 = vsel %vm395, %v364, 0
        %v409 = vsel %vm395, %v365, 0
        %v412 = vsel %vm395, %v366, 0
        %v415 = vsel %vm395, %v367, 0
        %v418 = vsel %vm395, %v368, 0
        %v421 = vsel %vm395, %v369, 0
        %v424 = vsel %vm395, %v370, 0
        %v427 = vsel %vm395, %v371, 0
        %v430 = vsel %vm395, %v372, 0
        %v433 = vsel %vm395, %v373, 0
        %v436 = vsel %vm395, %v374, 0
        %v439 = vsel %vm395, %v375, 0
        %v442 = vsel %vm395, %v376, 0
        %444 = vmatprep.subr.bf16.mxu0 0
        %445 = vmatpush1.bf16.msra.mxu0 0
        %446 = vmatprep.subr.bf16.mxu0 0
        %447 = vmatpush1.bf16.msra.mxu0 0
        %448 = vmatprep.subr.bf16.mxu0 0
        %449 = vmatpush1.bf16.msra.mxu0 0
        %450 = vmatprep.subr.bf16.mxu0 0
        %451 = vmatpush1.bf16.msra.mxu0 0
        %452 = vmatprep.subr.bf16.mxu0 0
        %453 = vmatpush1.bf16.msra.mxu0 0
        %454 = vmatprep.subr.bf16.mxu0 0
        %455 = vmatpush1.bf16.msra.mxu0 %v391
        %456 = vmatprep.subr.bf16.mxu0 0
        %457 = vmatpush1.bf16.msra.mxu0 %v390
        %458 = vmatprep.subr.bf16.mxu0 0
        %459 = vmatpush1.bf16.msra.mxu0 %v389
        %460 = vmatprep.subr.bf16.mxu0 0
        %461 = vmatpush2.bf16.msra.mxu0 0
        %462 = vmatprep.subr.bf16.mxu0 0
        %463 = vmatpush2.bf16.msra.mxu0 0
        %464 = vmatprep.subr.bf16.mxu0 0
        %465 = vmatpush2.bf16.msra.mxu0 0
        %466 = vmatprep.subr.bf16.mxu0 0
        %467 = vmatpush2.bf16.msra.mxu0 0
        %468 = vmatprep.subr.bf16.mxu0 0
        %469 = vmatpush2.bf16.msra.mxu0 0
        %470 = vmatprep.subr.bf16.mxu0 0
        %471 = vmatpush2.bf16.msra.mxu0 0
        %472 = vmatprep.subr.bf16.mxu0 0
        %473 = vmatpush2.bf16.msra.mxu0 0
        %474 = vmatprep.subr.bf16.mxu0 0
        %475 = vmatpush2.bf16.msra.mxu0 0
        %476 = vmatprep.mubr.bf16.mxu0 0
        %477 = vmatmul.mubr.bf16.gmra.mxu0 %v397
        %v478 = vpop.f32.mrf.mxu0
        %v479 = vadd.f32 0.0, %v478
        %v480 = vpop.f32.mrf.mxu0
        %v481 = vpop.f32.mrf.mxu0
        %v482 = vadd.f32 0.0, %v481
        %v483 = vpop.f32.mrf.mxu0
        %484 = vmatprep.mubr.bf16.mxu0 0
        %485 = vmatmul.mubr.bf16.gmra.mxu0 %v400
        %v486 = vpop.f32.mrf.mxu0
        %v487 = vadd.f32 0.0, %v486
        %v488 = vpop.f32.mrf.mxu0
        %v489 = vpop.f32.mrf.mxu0
        %v490 = vadd.f32 0.0, %v489
        %v491 = vpop.f32.mrf.mxu0
        %492 = vmatprep.mubr.bf16.mxu0 0
        %493 = vmatmul.mubr.bf16.gmra.mxu0 %v403
        %v494 = vpop.f32.mrf.mxu0
        %v495 = vadd.f32 0.0, %v494
        %v496 = vpop.f32.mrf.mxu0
        %v497 = vpop.f32.mrf.mxu0
        %v498 = vadd.f32 0.0, %v497
        %v499 = vpop.f32.mrf.mxu0
        %500 = vmatprep.mubr.bf16.mxu0 0
        %501 = vmatmul.mubr.bf16.gmra.mxu0 %v406
        %v502 = vpop.f32.mrf.mxu0
        %v503 = vadd.f32 0.0, %v502
        %v504 = vpop.f32.mrf.mxu0
        %v505 = vpop.f32.mrf.mxu0
        %v506 = vadd.f32 0.0, %v505
        %v507 = vpop.f32.mrf.mxu0
        %508 = vmatprep.mubr.bf16.mxu0 0
        %509 = vmatmul.mubr.bf16.gmra.mxu0 %v409
        %v510 = vpop.f32.mrf.mxu0
        %v511 = vadd.f32 0.0, %v510
        %v512 = vpop.f32.mrf.mxu0
        %v513 = vpop.f32.mrf.mxu0
        %v514 = vadd.f32 0.0, %v513
        %v515 = vpop.f32.mrf.mxu0
        %516 = vmatprep.mubr.bf16.mxu0 0
        %517 = vmatmul.mubr.bf16.gmra.mxu0 %v412
        %v518 = vpop.f32.mrf.mxu0
        %v519 = vadd.f32 0.0, %v518
        %v520 = vpop.f32.mrf.mxu0
        %v521 = vpop.f32.mrf.mxu0
        %v522 = vadd.f32 0.0, %v521
        %v523 = vpop.f32.mrf.mxu0
        %524 = vmatprep.mubr.bf16.mxu0 0
        %525 = vmatmul.mubr.bf16.gmra.mxu0 %v415
        %v526 = vpop.f32.mrf.mxu0
        %v527 = vadd.f32 0.0, %v526
        %v528 = vpop.f32.mrf.mxu0
        %v529 = vpop.f32.mrf.mxu0
        %v530 = vadd.f32 0.0, %v529
        %v531 = vpop.f32.mrf.mxu0
        %532 = vmatprep.mubr.bf16.mxu0 0
        %533 = vmatmul.mubr.bf16.gmra.mxu0 %v418
        %v534 = vpop.f32.mrf.mxu0
        %v535 = vadd.f32 0.0, %v534
        %v536 = vpop.f32.mrf.mxu0
        %v537 = vpop.f32.mrf.mxu0
        %v538 = vadd.f32 0.0, %v537
        %v539 = vpop.f32.mrf.mxu0
        %540 = vmatprep.mubr.bf16.mxu0 0
        %541 = vmatmul.mubr.bf16.gmra.mxu0 %v421
        %v542 = vpop.f32.mrf.mxu0
        %v543 = vadd.f32 0.0, %v542
        %v544 = vpop.f32.mrf.mxu0
        %v545 = vpop.f32.mrf.mxu0
        %v546 = vadd.f32 0.0, %v545
        %v547 = vpop.f32.mrf.mxu0
        %548 = vmatprep.mubr.bf16.mxu0 0
        %549 = vmatmul.mubr.bf16.gmra.mxu0 %v424
        %v550 = vpop.f32.mrf.mxu0
        %v551 = vadd.f32 0.0, %v550
        %v552 = vpop.f32.mrf.mxu0
        %v553 = vpop.f32.mrf.mxu0
        %v554 = vadd.f32 0.0, %v553
        %v555 = vpop.f32.mrf.mxu0
        %556 = vmatprep.mubr.bf16.mxu0 0
        %557 = vmatmul.mubr.bf16.gmra.mxu0 %v427
        %v558 = vpop.f32.mrf.mxu0
        %v559 = vadd.f32 0.0, %v558
        %v560 = vpop.f32.mrf.mxu0
        %v561 = vpop.f32.mrf.mxu0
        %v562 = vadd.f32 0.0, %v561
        %v563 = vpop.f32.mrf.mxu0
        %564 = vmatprep.mubr.bf16.mxu0 0
        %565 = vmatmul.mubr.bf16.gmra.mxu0 %v430
        %v566 = vpop.f32.mrf.mxu0
        %v567 = vadd.f32 0.0, %v566
        %v568 = vpop.f32.mrf.mxu0
        %v569 = vpop.f32.mrf.mxu0
        %v570 = vadd.f32 0.0, %v569
        %v571 = vpop.f32.mrf.mxu0
        %572 = vmatprep.mubr.bf16.mxu0 0
        %573 = vmatmul.mubr.bf16.gmra.mxu0 %v433
        %v574 = vpop.f32.mrf.mxu0
        %v575 = vadd.f32 0.0, %v574
        %v576 = vpop.f32.mrf.mxu0
        %v577 = vpop.f32.mrf.mxu0
        %v578 = vadd.f32 0.0, %v577
        %v579 = vpop.f32.mrf.mxu0
        %580 = vmatprep.mubr.bf16.mxu0 0
        %581 = vmatmul.mubr.bf16.gmra.mxu0 %v436
        %v582 = vpop.f32.mrf.mxu0
        %v583 = vadd.f32 0.0, %v582
        %v584 = vpop.f32.mrf.mxu0
        %v585 = vpop.f32.mrf.mxu0
        %v586 = vadd.f32 0.0, %v585
        %v587 = vpop.f32.mrf.mxu0
        %588 = vmatprep.mubr.bf16.mxu0 0
        %589 = vmatmul.mubr.bf16.gmra.mxu0 %v439
        %v590 = vpop.f32.mrf.mxu0
        %v591 = vadd.f32 0.0, %v590
        %v592 = vpop.f32.mrf.mxu0
        %v593 = vpop.f32.mrf.mxu0
        %v594 = vadd.f32 0.0, %v593
        %v595 = vpop.f32.mrf.mxu0
        %596 = vmatprep.mubr.bf16.mxu0 0
        %597 = vmatmul.mubr.bf16.gmra.mxu0 %v442
        %v598 = vpop.f32.mrf.mxu0
        %v599 = vadd.f32 0.0, %v598
        %v600 = vpop.f32.mrf.mxu0
        %v601 = vpop.f32.mrf.mxu0
        %v602 = vadd.f32 0.0, %v601
        %v603 = vpop.f32.mrf.mxu0
        %604 = vdwg.mxu0
        %v605 = vld [vmem:[%s253] sm:$0x1]
        %v607 = vlaneseq
        %v608 = vshrl.u32 %v607, 7
        %v609 = vsub.s32 0, %v608
        %v610 = vrot.slane %v605, %v609
        %v612 = vmul.f32 %v479, %v610
        %v613 = vmul.f32 %v482, %v610
        %v614 = vmul.f32 %v487, %v610
        %v615 = vmul.f32 %v490, %v610
        %v616 = vmul.f32 %v495, %v610
        %v617 = vmul.f32 %v498, %v610
        %v618 = vmul.f32 %v503, %v610
        %v619 = vmul.f32 %v506, %v610
        %v620 = vmul.f32 %v511, %v610
        %v621 = vmul.f32 %v514, %v610
        %v622 = vmul.f32 %v519, %v610
        %v623 = vmul.f32 %v522, %v610
        %v624 = vmul.f32 %v527, %v610
        %v625 = vmul.f32 %v530, %v610
        %v626 = vmul.f32 %v535, %v610
        %v627 = vmul.f32 %v538, %v610
        %v628 = vmul.f32 %v543, %v610
        %v629 = vmul.f32 %v546, %v610
        %v630 = vmul.f32 %v551, %v610
        %v631 = vmul.f32 %v554, %v610
        %v632 = vmul.f32 %v559, %v610
        %v633 = vmul.f32 %v562, %v610
        %v634 = vmul.f32 %v567, %v610
        %v635 = vmul.f32 %v570, %v610
        %v636 = vmul.f32 %v575, %v610
        %v637 = vmul.f32 %v578, %v610
        %v638 = vmul.f32 %v583, %v610
        %v639 = vmul.f32 %v586, %v610
        %v640 = vmul.f32 %v591, %v610
        %v641 = vmul.f32 %v594, %v610
        %v642 = vmul.f32 %v599, %v610
        %v643 = vmul.f32 %v602, %v610
        %v644 = vld [vmem:[%s256] sm:$0x1]
        %v646 = vlaneseq
        %v647 = vshrl.u32 %v646, 7
        %v648 = vsub.s32 0, %v647
        %v649 = vrot.slane %v644, %v648
        %v651 = vadd.f32 %v612, %v649
        %v652 = vadd.f32 %v613, %v649
        %v653 = vadd.f32 %v614, %v649
        %v654 = vadd.f32 %v615, %v649
        %v655 = vadd.f32 %v616, %v649
        %v656 = vadd.f32 %v617, %v649
        %v657 = vadd.f32 %v618, %v649
        %v658 = vadd.f32 %v619, %v649
        %v659 = vadd.f32 %v620, %v649
        %v660 = vadd.f32 %v621, %v649
        %v661 = vadd.f32 %v622, %v649
        %v662 = vadd.f32 %v623, %v649
        %v663 = vadd.f32 %v624, %v649
        %v664 = vadd.f32 %v625, %v649
        %v665 = vadd.f32 %v626, %v649
        %v666 = vadd.f32 %v627, %v649
        %v667 = vadd.f32 %v628, %v649
        %v668 = vadd.f32 %v629, %v649
        %v669 = vadd.f32 %v630, %v649
        %v670 = vadd.f32 %v631, %v649
        %v671 = vadd.f32 %v632, %v649
        %v672 = vadd.f32 %v633, %v649
        %v673 = vadd.f32 %v634, %v649
        %v674 = vadd.f32 %v635, %v649
        %v675 = vadd.f32 %v636, %v649
        %v676 = vadd.f32 %v637, %v649
        %v677 = vadd.f32 %v638, %v649
        %v678 = vadd.f32 %v639, %v649
        %v679 = vadd.f32 %v640, %v649
        %v680 = vadd.f32 %v641, %v649
        %v681 = vadd.f32 %v642, %v649
        %v682 = vadd.f32 %v643, %v649
        %v683 = vmax.f32 %v651, 0.0
        %v684 = vmax.f32 %v652, 0.0
        %v685 = vmax.f32 %v653, 0.0
        %v686 = vmax.f32 %v654, 0.0
        %v687 = vmax.f32 %v655, 0.0
        %v688 = vmax.f32 %v656, 0.0
        %v689 = vmax.f32 %v657, 0.0
        %v690 = vmax.f32 %v658, 0.0
        %v691 = vmax.f32 %v659, 0.0
        %v692 = vmax.f32 %v660, 0.0
        %v693 = vmax.f32 %v661, 0.0
        %v694 = vmax.f32 %v662, 0.0
        %v695 = vmax.f32 %v663, 0.0
        %v696 = vmax.f32 %v664, 0.0
        %v697 = vmax.f32 %v665, 0.0
        %v698 = vmax.f32 %v666, 0.0
        %v699 = vmax.f32 %v667, 0.0
        %v700 = vmax.f32 %v668, 0.0
        %v701 = vmax.f32 %v669, 0.0
        %v702 = vmax.f32 %v670, 0.0
        %v703 = vmax.f32 %v671, 0.0
        %v704 = vmax.f32 %v672, 0.0
        %v705 = vmax.f32 %v673, 0.0
        %v706 = vmax.f32 %v674, 0.0
        %v707 = vmax.f32 %v675, 0.0
        %v708 = vmax.f32 %v676, 0.0
        %v709 = vmax.f32 %v677, 0.0
        %v710 = vmax.f32 %v678, 0.0
        %v711 = vmax.f32 %v679, 0.0
        %v712 = vmax.f32 %v680, 0.0
        %v713 = vmax.f32 %v681, 0.0
        %v714 = vmax.f32 %v682, 0.0
        %v715 = vpack.c.bf16 %v684, %v683
        %v716 = vpack.c.bf16 %v686, %v685
        %v717 = vpack.c.bf16 %v688, %v687
        %v718 = vpack.c.bf16 %v690, %v689
        %v719 = vpack.c.bf16 %v692, %v691
        %v720 = vpack.c.bf16 %v694, %v693
        %v721 = vpack.c.bf16 %v696, %v695
        %v722 = vpack.c.bf16 %v698, %v697
        %v723 = vpack.c.bf16 %v700, %v699
        %v724 = vpack.c.bf16 %v702, %v701
        %v725 = vpack.c.bf16 %v704, %v703
        %v726 = vpack.c.bf16 %v706, %v705
        %v727 = vpack.c.bf16 %v708, %v707
        %v728 = vpack.c.bf16 %v710, %v709
        %v729 = vpack.c.bf16 %v712, %v711
        %v730 = vpack.c.bf16 %v714, %v713
        %v747 = vunpack.c.l.b16 %v715
        %v748 = vunpack.c.h.b16 %v715
        %v749 = vunpack.c.l.b16 %v716
        %v750 = vunpack.c.h.b16 %v716
        %v751 = vunpack.c.l.b16 %v717
        %v752 = vunpack.c.h.b16 %v717
        %v753 = vunpack.c.l.b16 %v718
        %v754 = vunpack.c.h.b16 %v718
        %v755 = vunpack.c.l.b16 %v719
        %v756 = vunpack.c.h.b16 %v719
        %v757 = vunpack.c.l.b16 %v720
        %v758 = vunpack.c.h.b16 %v720
        %v759 = vunpack.c.l.b16 %v721
        %v760 = vunpack.c.h.b16 %v721
        %v761 = vunpack.c.l.b16 %v722
        %v762 = vunpack.c.h.b16 %v722
        %v763 = vunpack.c.l.b16 %v723
        %v764 = vunpack.c.h.b16 %v723
        %v765 = vunpack.c.l.b16 %v724
        %v766 = vunpack.c.h.b16 %v724
        %v767 = vunpack.c.l.b16 %v725
        %v768 = vunpack.c.h.b16 %v725
        %v769 = vunpack.c.l.b16 %v726
        %v770 = vunpack.c.h.b16 %v726
        %v771 = vunpack.c.l.b16 %v727
        %v772 = vunpack.c.h.b16 %v727
        %v773 = vunpack.c.l.b16 %v728
        %v774 = vunpack.c.h.b16 %v728
        %v775 = vunpack.c.l.b16 %v729
        %v776 = vunpack.c.h.b16 %v729
        %v777 = vunpack.c.l.b16 %v730
        %v778 = vunpack.c.h.b16 %v730
        %v779 = vpack.c.b16 %v747, %v747
        %v780 = vpack.c.b16 %v748, %v748
        %v781 = vpack.c.b16 %v749, %v749
        %v782 = vpack.c.b16 %v750, %v750
        %v783 = vpack.c.b16 %v751, %v751
        %v784 = vpack.c.b16 %v752, %v752
        %v785 = vpack.c.b16 %v753, %v753
        %v786 = vpack.c.b16 %v754, %v754
        %v787 = vpack.c.b16 %v755, %v755
        %v788 = vpack.c.b16 %v756, %v756
        %v789 = vpack.c.b16 %v757, %v757
        %v790 = vpack.c.b16 %v758, %v758
        %v791 = vpack.c.b16 %v759, %v759
        %v792 = vpack.c.b16 %v760, %v760
        %v793 = vpack.c.b16 %v761, %v761
        %v794 = vpack.c.b16 %v762, %v762
        %v795 = vpack.c.b16 %v763, %v763
        %v796 = vpack.c.b16 %v764, %v764
        %v797 = vpack.c.b16 %v765, %v765
        %v798 = vpack.c.b16 %v766, %v766
        %v799 = vpack.c.b16 %v767, %v767
        %v800 = vpack.c.b16 %v768, %v768
        %v801 = vpack.c.b16 %v769, %v769
        %v802 = vpack.c.b16 %v770, %v770
        %v803 = vpack.c.b16 %v771, %v771
        %v804 = vpack.c.b16 %v772, %v772
        %v805 = vpack.c.b16 %v773, %v773
        %v806 = vpack.c.b16 %v774, %v774
        %v807 = vpack.c.b16 %v775, %v775
        %v808 = vpack.c.b16 %v776, %v776
        %v809 = vpack.c.b16 %v777, %v777
        %v810 = vpack.c.b16 %v778, %v778
        %843 = vst [vmem:[%s240] sm:$0xf] %v779
        %844 = vst [vmem:[%s240 + $0x4] sm:$0xf] %v780
        %845 = vst [vmem:[%s240 + $0x8] sm:$0xf] %v781
        %846 = vst [vmem:[%s240 + $0xc] sm:$0xf] %v782
        %847 = vst [vmem:[%s240 + $0x10] sm:$0xf] %v783
        %848 = vst [vmem:[%s240 + $0x14] sm:$0xf] %v784
        %849 = vst [vmem:[%s240 + $0x18] sm:$0xf] %v785
        %850 = vst [vmem:[%s240 + $0x1c] sm:$0xf] %v786
        %851 = vst [vmem:[%s240 + $0x20] sm:$0xf] %v787
        %852 = vst [vmem:[%s240 + $0x24] sm:$0xf] %v788
        %853 = vst [vmem:[%s240 + $0x28] sm:$0xf] %v789
        %854 = vst [vmem:[%s240 + $0x2c] sm:$0xf] %v790
        %855 = vst [vmem:[%s240 + $0x30] sm:$0xf] %v791
        %856 = vst [vmem:[%s240 + $0x34] sm:$0xf] %v792
        %857 = vst [vmem:[%s240 + $0x38] sm:$0xf] %v793
        %858 = vst [vmem:[%s240 + $0x3c] sm:$0xf] %v794
        %859 = vst [vmem:[%s240 + $0x40] sm:$0xf] %v795
        %860 = vst [vmem:[%s240 + $0x44] sm:$0xf] %v796
        %861 = vst [vmem:[%s240 + $0x48] sm:$0xf] %v797
        %862 = vst [vmem:[%s240 + $0x4c] sm:$0xf] %v798
        %863 = vst [vmem:[%s240 + $0x50] sm:$0xf] %v799
        %864 = vst [vmem:[%s240 + $0x54] sm:$0xf] %v800
        %865 = vst [vmem:[%s240 + $0x58] sm:$0xf] %v801
        %866 = vst [vmem:[%s240 + $0x5c] sm:$0xf] %v802
        %867 = vst [vmem:[%s240 + $0x60] sm:$0xf] %v803
        %868 = vst [vmem:[%s240 + $0x64] sm:$0xf] %v804
        %869 = vst [vmem:[%s240 + $0x68] sm:$0xf] %v805
        %870 = vst [vmem:[%s240 + $0x6c] sm:$0xf] %v806
        %871 = vst [vmem:[%s240 + $0x70] sm:$0xf] %v807
        %872 = vst [vmem:[%s240 + $0x74] sm:$0xf] %v808
        %873 = vst [vmem:[%s240 + $0x78] sm:$0xf] %v809
        %874 = vst [vmem:[%s240 + $0x7c] sm:$0xf] %v810
        %s875 = sand.u32 %s144, 1
        %s876 = scalar_lea.sflag [#allocation3], %s875
        %s877 = sand.u32 %s144, 1
        %s878 = smul.addr %s877, 128
        %s879 = scalar_lea.vmem [#allocation2], %s878
        // Predicated region
        $region37: #{basic_conv2d.1} parent=35 // pred_check
          %p880 = pneg %p154
        $region38: #{basic_conv2d.1} parent=35 // pred_check_branch
          %882 = sbr.rel (%p880) target = $region40
        $region39: #{basic_conv2d.1} parent=35 // pred_region
          %s883 = smul.u32 32, %s22
          %s885 = ssub.s32 2048, 2048
          %886 = vsyncadd %s876, %s885
          %s887 = sadd.s32 %s23, %s883
          %s888 = smul.addr %s887, 64
          %s889 = scalar_lea.hbm %s4, %s888
          %s890 = sshll.u32 %s879, 4
          %s891 = int_to_ptr.vmem [resolvable:$true] %s890
          %896 = dma.vmem_to_hbm [thread:$0]  %s891, 2048, %s889, %s876, 64, 64, 4
        $region40: #{basic_conv2d.1} parent=35 // pred_fallthru
          _
      $region36: #{basic_conv2d.1} parent=5 // pred_fallthru
        _
      %p897 = scmp.le.s32.totalorder 2, %s13
      // Predicated region
      $region41: #{basic_conv2d.1} parent=5 // pred_check
        %p898 = pneg %p897
      $region42: #{basic_conv2d.1} parent=5 // pred_check_branch
        %900 = sbr.rel (%p898) target = $region44
      $region43: #{basic_conv2d.1} parent=5 // pred_region
        %s901 = ssub.s32 %s13, 2
        // Predicated region
        $region45: #{basic_conv2d.1} parent=43 // pred_check
          %p902 = pneg %p160
        $region46: #{basic_conv2d.1} parent=43 // pred_check_branch
          %904 = sbr.rel (%p902) target = $region48
        $region47: #{basic_conv2d.1} parent=43 // pred_region
          %s905 = sand.u32 %s145, 1
          %s906 = scalar_lea.sflag [#allocation3], %s905
          %s907 = sand.u32 %s145, 1
          %s908 = smul.addr %s907, 128
          %s909 = scalar_lea.vmem [#allocation2], %s908
          %910 = dma.done %s906, 2048
        $region48: #{basic_conv2d.1} parent=43 // pred_fallthru
          _
      $region44: #{basic_conv2d.1} parent=5 // pred_fallthru
        _
    $region6: #{basic_conv2d.1} parent=1 // loop_footer
      %s17 = sadd.s32 1, %s13
    $region7: #{basic_conv2d.1} parent=1 // loop_footer_branch
      %12 = sbr.rel target = $region3
    $region8: #{basic_conv2d.1} parent=1 // loop_exit
      _
    %911 = vsyncpa [#allocation3], 1
    %s912 = scalar_lea.sflag [#allocation3], 1
    %913 = vsyncpa %s912, 1

</llo_original>
